<compile_context>
chip_gen: v6e
topology: v6e:2x2x1
jax: 0.10.0
libtpu: 0.0.40
codegen_flags: <defaults>
</compile_context>

<pallas_src>
import functools

import jax
import jax.numpy as jnp
from jax.experimental import pallas as pl
from jax.experimental.pallas import tpu as pltpu

_LN_EPS = 1e-5


def _round_up(x, m):
    return (x + m - 1) // m * m


def _tile_bytes(rows, cols, elem_bytes):
    """Bytes one (rows, cols) operand occupies in VMEM after (8, 128) tile padding."""
    return _round_up(rows, 8) * _round_up(cols, 128) * elem_bytes


def _tpu_chip_info():
    """Best-effort (vmem_capacity_bytes, num_tensorcores) with conservative fallbacks."""
    vmem_capacity = 64 << 20          # assume the smallest (v7x) when unknown
    try:
        info = pltpu.get_tpu_info()
        vmem_capacity = int(getattr(info, "vmem_capacity_bytes", vmem_capacity))
    except Exception:
        pass
    kind = ""
    try:
        kind = jax.devices()[0].device_kind.lower()
    except Exception:
        pass
    two_tc = any(tag in kind for tag in ("v4", "v5p", "v7", "7x"))
    return vmem_capacity, (2 if two_tc else 1)


def _input_wrapper_kernel(x_ref, w_ref, m_ref, o_ref, *, inv_n):
    """Fused conv-as-matmul + per-sample LayerNorm + ELU for one block of samples.

    x_ref: (block_n*OH_pad, K2+1)  compute dtype; last column is the row-validity indicator
           (so the bias folded into the last weight row hits real rows only).
    w_ref: (K2+1, OWC_pad)         compute dtype; zero in padded lanes.
    m_ref: (OH_pad, OWC_pad)       f32; 1.0 at real (oh, ow*C_out+co) positions.
    o_ref: (block_n, OH_pad, OWC_pad) f32.
    """
    block_n, oh_pad, owc_pad = o_ref.shape

    # Conv (+bias) as ONE block-wide 2D MXU matmul over M = block_n*OH_pad rows.
    y2 = jnp.dot(x_ref[...], w_ref[...], preferred_element_type=jnp.float32)
    # Tile-aligned regrouping of rows into (sample, row): OH_pad % 8 == 0 and
    # OWC_pad % 128 == 0, so this is a pure vreg regrouping (no relayout).
    y = y2.reshape(block_n, oh_pad, owc_pad)          # padded rows / lanes are exactly 0

    # Per-sample LayerNorm over all real (OH, OW, C_out) elements, two-pass mean/variance
    # (padded positions contribute exactly 0 to the mean; variance pass is masked).
    s1 = jnp.sum(jnp.sum(y, axis=-1, keepdims=True), axis=1, keepdims=True)   # (block_n,1,1)
    mean = s1 * inv_n
    dev = y - mean
    s2 = jnp.sum(jnp.sum(dev * dev * m_ref[...], axis=-1, keepdims=True), axis=1,
                 keepdims=True)
    y_norm = dev * jax.lax.rsqrt(s2 * inv_n + _LN_EPS)

    # ELU(alpha=1).  Padded positions hold finite garbage; the wrapper slices them off.
    o_ref[...] = jnp.where(y_norm > 0, y_norm, jnp.exp(y_norm) - 1.0).astype(o_ref.dtype)


def make_input_wrapper_params(conv_w, conv_b, spatial_hw, *, compute_dtype=jnp.bfloat16):
    """Fold the PyTorch conv (and the permutes around it) into a matmul weight + LN mask.

    Built ONCE per shape outside the forward (hoisted out of the per-call path).
    conv_w: (C_out, C_in, 2, 2) OIHW; conv_b: (C_out,).  Returns (w_big, mask).
    """
    H, W = spatial_hw
    assert H % 2 == 0 and W % 2 == 0, "space-to-depth lowering assumes even H, W (pad=1, k=s=2)"
    C_out, C_in, kh, kw = conv_w.shape
    assert (kh, kw) == (2, 2)
    Hp, Wp = H + 2, W + 2
    OH, OW = Hp // 2, Wp // 2
    K2 = 2 * Wp * C_in
    OWC = OW * C_out
    OH_pad = _round_up(OH, 8)
    OWC_pad = _round_up(OWC, 128)

    # w_big[(v, wp, ci), (ow, co)] = conv_w[co, ci, u, v] iff wp == 2*ow + u
    # (v = tap along the original H axis = PyTorch kW; u = tap along W = PyTorch kH, i.e.
    #  the permute(0,3,2,1) before/after the conv is folded into this layout).
    # TODO(synk): at larger W switch to two strided-tap matmuls instead of the block-diagonal
    # weight (it inflates MXU flops ~OW and memory O(W^2*C_in*C_out)); fine at W <= ~32.
    w_taps = jnp.transpose(conv_w.astype(jnp.float32), (3, 2, 1, 0))       # (kw, kh, ci, co)
    eye_ow = jnp.eye(OW, dtype=jnp.float32)
    w_big = jnp.einsum("vuic,pq->vpuiqc", w_taps, eye_ow).reshape(K2, OWC)
    w_big = jnp.pad(w_big, ((0, 0), (0, OWC_pad - OWC)))                   # lane-dense output
    # Fold the conv bias into one extra weight row (matched by the indicator column in x).
    b_row = jnp.pad(jnp.tile(conv_b.astype(jnp.float32), OW), (0, OWC_pad - OWC))
    w_big = jnp.concatenate([w_big, b_row[None, :]], axis=0).astype(compute_dtype)

    mask = jnp.zeros((OH_pad, OWC_pad), jnp.float32).at[:OH, :OWC].set(1.0)
    return w_big, mask


def input_wrapper_forward(x, state, w_big, mask, *, c_out, block_n=None):
    """x: (N, H, W, C_in) NHWC.  w_big/mask from make_input_wrapper_params."""
    N, H, W, C_in = x.shape
    K2a, OWC_pad = w_big.shape
    OH_pad = mask.shape[0]
    Hp, Wp = H + 2, W + 2
    OH, OW = Hp // 2, Wp // 2
    OWC = OW * c_out
    K2 = 2 * Wp * C_in
    assert K2a == K2 + 1 and OH <= OH_pad and OWC <= OWC_pad

    compute_dtype = w_big.dtype
    # TODO(synk): jnp.pad materializes a padded copy of x in HBM; for large H/W move the
    # padding into the kernel (VMEM scratch + pltpu.make_async_copy of the interior rows).
    x_pad = jnp.pad(x.astype(compute_dtype), ((0, 0), (1, 1), (1, 1), (0, 0)))  # (N,Hp,Wp,Cin)
    x3 = x_pad.reshape(N, OH, K2)                       # free row-major reshape (Hp == 2*OH)
    ones_col = jnp.ones((N, OH, 1), compute_dtype)      # row-validity indicator -> folded bias
    x3 = jnp.concatenate([x3, ones_col], axis=-1)       # (N, OH, K2+1)
    x3 = jnp.pad(x3, ((0, 0), (0, OH_pad - OH), (0, 0)))  # zero rows drop out of LN stats
    x2d = x3.reshape(N * OH_pad, K2a)

    in_bytes = jnp.dtype(compute_dtype).itemsize
    vmem_capacity, num_tc = _tpu_chip_info()
    vmem_budget = min(vmem_capacity // 2, 48 << 20)
    # (8,128)-tile-padded, double-buffered VMEM accounting (input + output block per sample;
    # weight and mask are grid-invariant but still double-buffered by Pallas).
    per_sample = 2 * (_tile_bytes(OH_pad, K2a, in_bytes) + _tile_bytes(OH_pad, OWC_pad, 4))
    fixed = 2 * (_tile_bytes(K2a, OWC_pad, in_bytes) + _tile_bytes(OH_pad, OWC_pad, 4))
    cap = max(1, (vmem_budget - fixed) // per_sample)
    if block_n is None:
        # One grid step on single-TensorCore chips (v5e/v6e); 2-way "parallel" split only on
        # 2-TC chips (v7x/v5p/v4) and only when each step still streams enough bytes to
        # amortize the ~0.35us per-step pipeline overhead.
        if num_tc >= 2 and N >= 2 and (N // 2) * (per_sample // 2) >= (512 << 10):
            block_n = max(1, min(cap, pl.cdiv(N, 2)))
        else:
            block_n = max(1, min(cap, N))
    grid = (pl.cdiv(N, block_n),)

    est_vmem = fixed + block_n * per_sample
    vmem_limit = int(min(vmem_capacity * 3 // 4, max(32 << 20, 2 * est_vmem)))

    out_padded = pl.pallas_call(
        functools.partial(_input_wrapper_kernel, inv_n=1.0 / float(OH * OWC)),
        out_shape=jax.ShapeDtypeStruct((N, OH_pad, OWC_pad), jnp.float32),
        grid=grid,
        in_specs=[
            pl.BlockSpec((block_n * OH_pad, K2a), lambda i: (i, 0)),
            pl.BlockSpec((K2a, OWC_pad), lambda i: (0, 0)),
            pl.BlockSpec((OH_pad, OWC_pad), lambda i: (0, 0)),
        ],
        out_specs=pl.BlockSpec((block_n, OH_pad, OWC_pad), lambda i: (i, 0, 0)),
        compiler_params=pltpu.CompilerParams(
            dimension_semantics=("parallel",),
            vmem_limit_bytes=vmem_limit,
        ),
    )(x2d, w_big, mask)

    # Slice off the OH-row / lane padding; the final reshape is free (row-major).
    out = out_padded[:, :OH, :OWC].reshape(N, OH, OW, c_out)
    # TODO(synk): the PyTorch forward's host-side print() calls are intentionally omitted.
    return out, state


def _reference_forward(x, conv_w, conv_b):
    """Pure-XLA f32 reference with exact PyTorch InputWrapper semantics."""
    xt = jnp.transpose(x, (0, 3, 2, 1))                          # permute(0, 3, 2, 1)
    y = jax.lax.conv_general_dilated(
        xt, conv_w, window_strides=(2, 2), padding=((1, 1), (1, 1)),
        dimension_numbers=("NCHW", "OIHW", "NCHW"),
        precision=jax.lax.Precision.HIGHEST)
    y = y + conv_b[None, :, None, None]
    y = jnp.transpose(y, (0, 3, 2, 1))                           # permute back
    mean = jnp.mean(y, axis=(1, 2, 3), keepdims=True)
    var = jnp.mean((y - mean) ** 2, axis=(1, 2, 3), keepdims=True)
    yn = (y - mean) * jax.lax.rsqrt(var + _LN_EPS)
    return jnp.where(yn > 0, yn, jnp.expm1(yn))


if __name__ == "__main__":
    key = jax.random.PRNGKey(0)
    k_x, k_w, k_b = jax.random.split(key, 3)

    # Small shapes implied by the module: NHWC input, conv path (C_in=4 -> C_out=8).
    N, H, W, C_in = 2, 16, 16, 4
    C_out = 8

    x = jax.random.normal(k_x, (N, H, W, C_in), dtype=jnp.float32)
    state = jnp.zeros((N, 8), dtype=jnp.float32)     # passed through untouched

    fan_in = C_in * 2 * 2
    conv_w = jax.random.normal(k_w, (C_out, C_in, 2, 2), dtype=jnp.float32) / jnp.sqrt(fan_in)
    conv_b = 0.01 * jax.random.normal(k_b, (C_out,), dtype=jnp.float32)

    # Fold conv + permutes into the matmul weight once, outside the per-call path.
    w_big, mask = make_input_wrapper_params(conv_w, conv_b, (H, W))

    fwd = jax.jit(input_wrapper_forward, static_argnames=("c_out", "block_n"))
    out, new_state = fwd(x, state, w_big, mask, c_out=C_out)
    jax.block_until_ready((out, new_state))

    OH, OW = H // 2 + 1, W // 2 + 1
    assert out.shape == (N, OH, OW, C_out), out.shape
    assert new_state.shape == state.shape

    # Numerical parity vs. the f32 XLA reference (kernel uses bf16 MXU inputs with f32
    # accumulation and an all-f32 LayerNorm/ELU epilogue).
    ref = _reference_forward(x, conv_w, conv_b)
    max_err = float(jnp.max(jnp.abs(out - ref)))
    assert max_err < 1e-1, f"kernel vs reference max abs err {max_err}"
    print("KERNEL_OK")
</pallas_src>

<mosaic_0001>
module attributes {stable_mosaic.version = 11 : i64} {
  func.func @_input_wrapper_kernel(%arg0: i32, %arg1: memref<32x145xbf16, #tpu.memory_space<vmem>>, %arg2: memref<145x128xbf16, #tpu.memory_space<vmem>>, %arg3: memref<16x128xf32, #tpu.memory_space<vmem>>, %arg4: memref<2x16x128xf32, #tpu.memory_space<vmem>>) attributes {dimension_semantics = [#tpu.dimension_semantics<parallel>], iteration_bounds = array<i64: 1>, scalar_prefetch = 0 : i64, scratch_operands = 0 : i64, tpu.core_type = #tpu.core_type<tc>, window_params = [{transform_indices = @transform_0, window_bounds = array<i64: 32, 145>}, {pipeline_mode = #tpu.pipeline_mode<synchronous>, transform_indices = @transform_1, window_bounds = array<i64: 145, 128>}, {pipeline_mode = #tpu.pipeline_mode<synchronous>, transform_indices = @transform_2, window_bounds = array<i64: 16, 128>}, {transform_indices = @transform_3, window_bounds = array<i64: 2, 16, 128>}]} {
    %c0 = arith.constant 0 : index
    %c0_0 = arith.constant 0 : index
    %0 = vector.load %arg1[%c0, %c0_0] : memref<32x145xbf16, #tpu.memory_space<vmem>>, vector<32x145xbf16>
    %c0_1 = arith.constant 0 : index
    %c0_2 = arith.constant 0 : index
    %1 = vector.load %arg2[%c0_1, %c0_2] : memref<145x128xbf16, #tpu.memory_space<vmem>>, vector<145x128xbf16>
    %cst = arith.constant dense<0.000000e+00> : vector<32x128xf32>
    %2 = tpu.matmul %0, %1, %cst {dimension_numbers = #tpu.dot_dimension_numbers<[1], [0], [0], [1], [0, 0, 1, 1], [], []>} : vector<32x145xbf16>, vector<145x128xbf16>, vector<32x128xf32> -> vector<32x128xf32>
    %3 = vector.shape_cast %2 : vector<32x128xf32> to vector<2x16x128xf32>
    %cst_3 = arith.constant dense<0.000000e+00> : vector<2x16xf32>
    %4 = vector.multi_reduction <add>, %3, %cst_3 [2] : vector<2x16x128xf32> to vector<2x16xf32>
    %5 = vector.shape_cast %4 : vector<2x16xf32> to vector<2x16x1xf32>
    %cst_4 = arith.constant dense<0.000000e+00> : vector<2x1xf32>
    %6 = vector.multi_reduction <add>, %5, %cst_4 [1] : vector<2x16x1xf32> to vector<2x1xf32>
    %7 = vector.shape_cast %6 : vector<2x1xf32> to vector<2x1x1xf32>
    %cst_5 = arith.constant 0.00154320989 : f32
    %8 = vector.broadcast %cst_5 : f32 to vector<2x1x1xf32>
    %9 = arith.mulf %7, %8 : vector<2x1x1xf32>
    %10 = vector.broadcast %9 : vector<2x1x1xf32> to vector<2x16x128xf32>
    %11 = arith.subf %3, %10 : vector<2x16x128xf32>
    %12 = arith.mulf %11, %11 : vector<2x16x128xf32>
    %c0_6 = arith.constant 0 : index
    %c0_7 = arith.constant 0 : index
    %13 = vector.load %arg3[%c0_6, %c0_7] : memref<16x128xf32, #tpu.memory_space<vmem>>, vector<16x128xf32>
    %14 = vector.shape_cast %13 : vector<16x128xf32> to vector<1x16x128xf32>
    %15 = vector.broadcast %14 : vector<1x16x128xf32> to vector<2x16x128xf32>
    %16 = arith.mulf %12, %15 : vector<2x16x128xf32>
    %cst_8 = arith.constant dense<0.000000e+00> : vector<2x16xf32>
    %17 = vector.multi_reduction <add>, %16, %cst_8 [2] : vector<2x16x128xf32> to vector<2x16xf32>
    %18 = vector.shape_cast %17 : vector<2x16xf32> to vector<2x16x1xf32>
    %cst_9 = arith.constant dense<0.000000e+00> : vector<2x1xf32>
    %19 = vector.multi_reduction <add>, %18, %cst_9 [1] : vector<2x16x1xf32> to vector<2x1xf32>
    %20 = vector.shape_cast %19 : vector<2x1xf32> to vector<2x1x1xf32>
    %cst_10 = arith.constant 0.00154320989 : f32
    %21 = vector.broadcast %cst_10 : f32 to vector<2x1x1xf32>
    %22 = arith.mulf %20, %21 : vector<2x1x1xf32>
    %cst_11 = arith.constant 9.99999974E-6 : f32
    %23 = vector.broadcast %cst_11 : f32 to vector<2x1x1xf32>
    %24 = arith.addf %22, %23 : vector<2x1x1xf32>
    %25 = math.rsqrt %24 : vector<2x1x1xf32>
    %26 = vector.broadcast %25 : vector<2x1x1xf32> to vector<2x16x128xf32>
    %27 = arith.mulf %11, %26 : vector<2x16x128xf32>
    %cst_12 = arith.constant 0.000000e+00 : f32
    %28 = vector.broadcast %cst_12 : f32 to vector<2x16x128xf32>
    %29 = arith.cmpf ogt, %27, %28 : vector<2x16x128xf32>
    %30 = math.exp %27 : vector<2x16x128xf32>
    %cst_13 = arith.constant 1.000000e+00 : f32
    %31 = vector.broadcast %cst_13 : f32 to vector<2x16x128xf32>
    %32 = arith.subf %30, %31 : vector<2x16x128xf32>
    %33 = arith.select %29, %27, %32 : vector<2x16x128xi1>, vector<2x16x128xf32>
    %c0_14 = arith.constant 0 : index
    %c0_15 = arith.constant 0 : index
    %c0_16 = arith.constant 0 : index
    %34 = vector.load %arg4[%c0_14, %c0_15, %c0_16] : memref<2x16x128xf32, #tpu.memory_space<vmem>>, vector<2x16x128xf32>
    tpu.vector_store %arg4[%c0_14, %c0_15, %c0_16], %33 {strides = array<i32>} : memref<2x16x128xf32, #tpu.memory_space<vmem>>, vector<2x16x128xf32>,
    return
  }
  func.func @transform_0(%arg0: i32) -> (i32, i32) {
    %c0_i32 = arith.constant 0 : i32
    %c0_i32_0 = arith.constant 0 : i32
    return %arg0, %c0_i32 : i32, i32
  }
  func.func @transform_1(%arg0: i32) -> (i32, i32) {
    %c0_i32 = arith.constant 0 : i32
    %c0_i32_0 = arith.constant 0 : i32
    %c0_i32_1 = arith.constant 0 : i32
    return %c0_i32, %c0_i32_0 : i32, i32
  }
  func.func @transform_2(%arg0: i32) -> (i32, i32) {
    %c0_i32 = arith.constant 0 : i32
    %c0_i32_0 = arith.constant 0 : i32
    %c0_i32_1 = arith.constant 0 : i32
    return %c0_i32, %c0_i32_0 : i32, i32
  }
  func.func @transform_3(%arg0: i32) -> (i32, i32, i32) {
    %c0_i32 = arith.constant 0 : i32
    %c0_i32_0 = arith.constant 0 : i32
    %c0_i32_1 = arith.constant 0 : i32
    return %arg0, %c0_i32, %c0_i32_0 : i32, i32, i32
  }
}

</mosaic_0001>

<llo_original>
// kernel: input_wrapper_forward.1
$region0: #{input_wrapper_forward.1}
  #allocation0 [shape = 'u32[]', space=smem, size = 0x4, offset = 0x4, fixed_abs, tag = 'smem constant byte address 0x4 - core index']
  #allocation1 [shape = 'u32[144,128]{1,0:T(1,128)}', space=vmem, size = 0x12000, scoped, tag = 'internal scratch']
  %s0 = inlined_call_operand.vmem [shape: bf16[32,145], index: 0, kind: input, shape index: {}]
  %s1 = inlined_call_operand.vmem [shape: bf16[145,128], index: 1, kind: input, shape index: {}]
  %s2 = inlined_call_operand.vmem [shape: f32[16,128], index: 2, kind: input, shape index: {}]
  %s3 = inlined_call_operand.vmem [shape: f32[2,16,128], index: 3, kind: output, shape index: {}]
  %s4 = sld [smem:[#allocation0]]
  $region22: #{input_wrapper_forward.1} parent=0
    _
  %s6 = ssub.s32 1, %s4
  %s7 = scalar_select 0, %s6, %s4
  // Predicated region
  $region2: #{input_wrapper_forward.1} parent=0 // pred_check
    _
  $region3: #{input_wrapper_forward.1} parent=0 // pred_check_branch
    %9 = sbr.rel (0) target = $region5
  $region4: #{input_wrapper_forward.1} parent=0 // pred_region
    _
  $region5: #{input_wrapper_forward.1} parent=0 // pred_fallthru
    _
  // Predicated region
  $region6: #{input_wrapper_forward.1} parent=0 // pred_check
    _
  $region7: #{input_wrapper_forward.1} parent=0 // pred_check_branch
    %11 = sbr.rel (0) target = $region9
  $region8: #{input_wrapper_forward.1} parent=0 // pred_region
    _
  $region9: #{input_wrapper_forward.1} parent=0 // pred_fallthru
    _
  // Predicated region
  $region10: #{input_wrapper_forward.1} parent=0 // pred_check
    _
  $region11: #{input_wrapper_forward.1} parent=0 // pred_check_branch
    %13 = sbr.rel (0) target = $region13
  $region12: #{input_wrapper_forward.1} parent=0 // pred_region
    _
  $region13: #{input_wrapper_forward.1} parent=0 // pred_fallthru
    _
  %v15 = vld [vmem:[%s0] sm:$0xff]
  %v16 = vld [vmem:[%s0 + $0x8] sm:$0xff]
  %v17 = vld [vmem:[%s0 + $0x10] sm:$0xff]
  %v18 = vld [vmem:[%s0 + $0x18] sm:$0xff]
  %v19 = vld [vmem:[%s1] sm:$0xf]
  %v20 = vld [vmem:[%s1 + $0x4] sm:$0xf]
  %v21 = vld [vmem:[%s1 + $0x8] sm:$0xf]
  %v22 = vld [vmem:[%s1 + $0xc] sm:$0xf]
  %v23 = vld [vmem:[%s1 + $0x10] sm:$0xf]
  %v24 = vld [vmem:[%s1 + $0x14] sm:$0xf]
  %v25 = vld [vmem:[%s1 + $0x18] sm:$0xf]
  %v26 = vld [vmem:[%s1 + $0x1c] sm:$0xf]
  %v27 = vld [vmem:[%s1 + $0x20] sm:$0xf]
  %v28 = vld [vmem:[%s1 + $0x24] sm:$0xf]
  %v29 = vld [vmem:[%s1 + $0x28] sm:$0xf]
  %v30 = vld [vmem:[%s1 + $0x2c] sm:$0xf]
  %v31 = vld [vmem:[%s1 + $0x30] sm:$0xf]
  %v32 = vld [vmem:[%s1 + $0x34] sm:$0xf]
  %v33 = vld [vmem:[%s1 + $0x38] sm:$0xf]
  %v34 = vld [vmem:[%s1 + $0x3c] sm:$0xf]
  %v35 = vld [vmem:[%s1 + $0x40] sm:$0xf]
  %v36 = vld [vmem:[%s1 + $0x44] sm:$0xf]
  %v37 = vld [vmem:[%s1 + $0x48] sm:$0x1]
  %v42 = vunpack.c.l.b16 %v15
  %v43 = vunpack.c.h.b16 %v15
  %v44 = vunpack.c.l.b16 %v16
  %v45 = vunpack.c.h.b16 %v16
  %v46 = vunpack.c.l.b16 %v17
  %v47 = vunpack.c.h.b16 %v17
  %v48 = vunpack.c.l.b16 %v18
  %v49 = vunpack.c.h.b16 %v18
  %v50 = vpack.c.b16 %v44, %v42
  %v51 = vpack.c.b16 %v45, %v43
  %v52 = vpack.c.b16 %v48, %v46
  %v53 = vpack.c.b16 %v49, %v47
  %v75 = vunpack.c.l.b16 %v19
  %v76 = vunpack.c.l.b16 %v20
  %v77 = vunpack.c.l.b16 %v21
  %v78 = vunpack.c.l.b16 %v22
  %v79 = vunpack.c.l.b16 %v23
  %v80 = vunpack.c.l.b16 %v24
  %v81 = vunpack.c.l.b16 %v25
  %v82 = vunpack.c.l.b16 %v26
  %v83 = vunpack.c.l.b16 %v27
  %v84 = vunpack.c.l.b16 %v28
  %v85 = vunpack.c.l.b16 %v29
  %v86 = vunpack.c.l.b16 %v30
  %v87 = vunpack.c.l.b16 %v31
  %v88 = vunpack.c.l.b16 %v32
  %v89 = vunpack.c.l.b16 %v33
  %v90 = vunpack.c.l.b16 %v34
  %v91 = vunpack.c.l.b16 %v35
  %v92 = vunpack.c.l.b16 %v36
  %v93 = vunpack.c.l.b16 %v37
  %v94 = vpack.c.b16 %v76, %v75
  %v95 = vpack.c.b16 %v78, %v77
  %v96 = vpack.c.b16 %v80, %v79
  %v97 = vpack.c.b16 %v82, %v81
  %v98 = vpack.c.b16 %v84, %v83
  %v99 = vpack.c.b16 %v86, %v85
  %v100 = vpack.c.b16 %v88, %v87
  %v101 = vpack.c.b16 %v90, %v89
  %v102 = vpack.c.b16 %v92, %v91
  %v103 = vpack.c.b16 %v93, %v93
  %vm113 = vcmask 138240
  %v115 = vsel %vm113, %v51, 0
  %v118 = vsel %vm113, %v53, 0
  %vm120 = vcmask 1040384
  %v121 = vsel 0, 4294967295, 65535
  %v122 = vsel %vm120, %v121, 0
  %v124 = vand.u32 %v103, %v122
  %126 = vmatprep.subr.bf16.mxu0 0
  %127 = vmatpush1.bf16.msra.mxu0 %v101
  %128 = vmatprep.subr.bf16.mxu0 0
  %129 = vmatpush1.bf16.msra.mxu0 %v100
  %130 = vmatprep.subr.bf16.mxu0 0
  %131 = vmatpush1.bf16.msra.mxu0 %v99
  %132 = vmatprep.subr.bf16.mxu0 0
  %133 = vmatpush1.bf16.msra.mxu0 %v98
  %134 = vmatprep.subr.bf16.mxu0 0
  %135 = vmatpush1.bf16.msra.mxu0 %v97
  %136 = vmatprep.subr.bf16.mxu0 0
  %137 = vmatpush1.bf16.msra.mxu0 %v96
  %138 = vmatprep.subr.bf16.mxu0 0
  %139 = vmatpush1.bf16.msra.mxu0 %v95
  %140 = vmatprep.subr.bf16.mxu0 0
  %141 = vmatpush1.bf16.msra.mxu0 %v94
  %142 = vmatprep.subr.bf16.mxu0 0
  %143 = vmatpush2.bf16.msra.mxu0 0
  %144 = vmatprep.subr.bf16.mxu0 0
  %145 = vmatpush2.bf16.msra.mxu0 0
  %146 = vmatprep.subr.bf16.mxu0 0
  %147 = vmatpush2.bf16.msra.mxu0 0
  %148 = vmatprep.subr.bf16.mxu0 0
  %149 = vmatpush2.bf16.msra.mxu0 0
  %150 = vmatprep.subr.bf16.mxu0 0
  %151 = vmatpush2.bf16.msra.mxu0 0
  %152 = vmatprep.subr.bf16.mxu0 0
  %153 = vmatpush2.bf16.msra.mxu0 0
  %154 = vmatprep.subr.bf16.mxu0 0
  %155 = vmatpush2.bf16.msra.mxu0 %v124
  %156 = vmatprep.subr.bf16.mxu0 0
  %157 = vmatpush2.bf16.msra.mxu0 %v102
  %158 = vmatprep.mubr.bf16.mxu0 %v115
  %159 = vmatmul.mubr.bf16.gmra.mxu0 %v50
  %v160 = vpop.f32.mrf.mxu0
  %v161 = vadd.f32 0.0, %v160
  %v162 = vpop.f32.mrf.mxu0
  %v163 = vpop.f32.mrf.mxu0
  %v164 = vadd.f32 0.0, %v163
  %v165 = vpop.f32.mrf.mxu0
  %166 = vmatprep.mubr.bf16.mxu0 %v118
  %167 = vmatmul.mubr.bf16.gmra.mxu0 %v52
  %v168 = vpop.f32.mrf.mxu0
  %v169 = vadd.f32 0.0, %v168
  %v170 = vpop.f32.mrf.mxu0
  %v171 = vpop.f32.mrf.mxu0
  %v172 = vadd.f32 0.0, %v171
  %v173 = vpop.f32.mrf.mxu0
  %174 = vdwg.mxu0
  %175 = vadd.xlane.f32.xlu0 %v161
  %v176 = vpop.xlane.xlu0 %175
  %177 = vadd.xlane.f32.xlu0 %v164
  %v178 = vpop.xlane.xlu0 %177
  %179 = vadd.xlane.f32.xlu0 %v169
  %v180 = vpop.xlane.xlu0 %179
  %181 = vadd.xlane.f32.xlu0 %v172
  %v182 = vpop.xlane.xlu0 %181
  %v183 = vadd.f32 %v176, %v178
  %v184 = vrot.slane %v183, 4
  %v185 = vadd.f32 %v183, %v184
  %v186 = vrot.slane %v185, 2
  %v187 = vadd.f32 %v185, %v186
  %v188 = vrot.slane %v187, 1
  %v189 = vadd.f32 %v187, %v188
  %v190 = vadd.f32 %v180, %v182
  %v191 = vrot.slane %v190, 4
  %v192 = vadd.f32 %v190, %v191
  %v193 = vrot.slane %v192, 2
  %v194 = vadd.f32 %v192, %v193
  %v195 = vrot.slane %v194, 1
  %v196 = vadd.f32 %v194, %v195
  %v197 = vmul.f32 %v189, 0.0015432099
  %v198 = vmul.f32 %v196, 0.0015432099
  %v199 = vsub.f32 %v161, %v197
  %v200 = vsub.f32 %v164, %v197
  %v201 = vsub.f32 %v169, %v198
  %v202 = vsub.f32 %v172, %v198
  %v203 = vmul.f32 %v199, %v199
  %v204 = vmul.f32 %v200, %v200
  %v205 = vmul.f32 %v201, %v201
  %v206 = vmul.f32 %v202, %v202
  %v207 = vld [vmem:[%s2] sm:$0xff]
  %v208 = vld [vmem:[%s2 + $0x8] sm:$0xff]
  %v209 = vmul.f32 %v203, %v207
  %v210 = vmul.f32 %v204, %v208
  %v211 = vmul.f32 %v205, %v207
  %v212 = vmul.f32 %v206, %v208
  %213 = vadd.xlane.f32.xlu0 %v209
  %v214 = vpop.xlane.xlu0 %213
  %215 = vadd.xlane.f32.xlu0 %v210
  %v216 = vpop.xlane.xlu0 %215
  %217 = vadd.xlane.f32.xlu0 %v211
  %v218 = vpop.xlane.xlu0 %217
  %219 = vadd.xlane.f32.xlu0 %v212
  %v220 = vpop.xlane.xlu0 %219
  %v221 = vadd.f32 %v214, %v216
  %v222 = vrot.slane %v221, 4
  %v223 = vadd.f32 %v221, %v222
  %v224 = vrot.slane %v223, 2
  %v225 = vadd.f32 %v223, %v224
  %v226 = vrot.slane %v225, 1
  %v227 = vadd.f32 %v225, %v226
  %v228 = vadd.f32 %v218, %v220
  %v229 = vrot.slane %v228, 4
  %v230 = vadd.f32 %v228, %v229
  %v231 = vrot.slane %v230, 2
  %v232 = vadd.f32 %v230, %v231
  %v233 = vrot.slane %v232, 1
  %v234 = vadd.f32 %v232, %v233
  %v235 = vmul.f32 %v227, 0.0015432099
  %v236 = vmul.f32 %v234, 0.0015432099
  %v237 = vadd.f32 %v235, 1e-05
  %v238 = vadd.f32 %v236, 1e-05
  %v239 = vrsqrt.pop %v237
  %v240 = vrsqrt.pop %v238
  %v241 = vmul.f32 %v199, %v239
  %v242 = vmul.f32 %v200, %v239
  %v243 = vmul.f32 %v201, %v240
  %v244 = vmul.f32 %v202, %v240
  %vm245 = vcmp.gt.f32.partialorder %v241, 0.0
  %vm246 = vcmp.gt.f32.partialorder %v242, 0.0
  %vm247 = vcmp.gt.f32.partialorder %v243, 0.0
  %vm248 = vcmp.gt.f32.partialorder %v244, 0.0
  %v249 = vmul.f32 %v241, 1.442695
  %v250 = vpow.pop %v249
  %v251 = vmul.f32 %v242, 1.442695
  %v252 = vpow.pop %v251
  %v253 = vmul.f32 %v243, 1.442695
  %v254 = vpow.pop %v253
  %v255 = vmul.f32 %v244, 1.442695
  %v256 = vpow.pop %v255
  %v257 = vsub.f32 %v250, 1.0
  %v258 = vsub.f32 %v252, 1.0
  %v259 = vsub.f32 %v254, 1.0
  %v260 = vsub.f32 %v256, 1.0
  %v261 = vsel %vm245, %v241, %v257
  %v262 = vsel %vm246, %v242, %v258
  %v263 = vsel %vm247, %v243, %v259
  %v264 = vsel %vm248, %v244, %v260
  %265 = vst [vmem:[%s3] sm:$0xff] %v261
  %266 = vst [vmem:[%s3 + $0x8] sm:$0xff] %v262
  %267 = vst [vmem:[%s3 + $0x10] sm:$0xff] %v263
  %268 = vst [vmem:[%s3 + $0x18] sm:$0xff] %v264
  // Predicated region
  $region14: #{input_wrapper_forward.1} parent=0 // pred_check
    _
  $region15: #{input_wrapper_forward.1} parent=0 // pred_check_branch
    %270 = sbr.rel (0) target = $region17
  $region16: #{input_wrapper_forward.1} parent=0 // pred_region
    _
  $region17: #{input_wrapper_forward.1} parent=0 // pred_fallthru
    _
  // Predicated region
  $region18: #{input_wrapper_forward.1} parent=0 // pred_check
    _
  $region19: #{input_wrapper_forward.1} parent=0 // pred_check_branch
    %272 = sbr.rel (0) target = $region21
  $region20: #{input_wrapper_forward.1} parent=0 // pred_region
    _
  $region21: #{input_wrapper_forward.1} parent=0 // pred_fallthru
    _

</llo_original>
